<compile_context>
chip_gen: v6e
topology: v6e:2x2x1
jax: 0.10.0
libtpu: 0.0.40
codegen_flags: <defaults>
</compile_context>

<pallas_src>
import functools

import jax
import jax.numpy as jnp
from jax.experimental import pallas as pl
from jax.experimental.pallas import tpu as pltpu


def _round_up(n, m):
    return -(-n // m) * m


def _round_down(n, m):
    return (n // m) * m


def _tta_regression_kernel(x_ref, coeffs_ref, o_ref, *, n_augs, n_classes):
    """x_ref: (TB, A*C) x.dtype, coeffs_ref: (1, A*C) f32, o_ref: (TB, C)."""
    C = n_classes

    def chunk(a):
        lo = a * C                                   # static lane offset
        xa = x_ref[:, lo:lo + C].astype(jnp.float32)  # (TB, C) lane-dense load
        return coeffs_ref[:, lo:lo + C] * xa          # (1,C)*(TB,C) VPU multiply

    acc = chunk(0)                                    # f32 accumulation
    for a in range(1, n_augs):                        # short static unroll over A
        acc = acc + chunk(a)
    o_ref[...] = acc.astype(o_ref.dtype)


def tta_regression_forward(x, coeffs, temperature=1.0, *,
                           target_block_bytes=4 * 1024 * 1024):
    """Pallas implementation of TTARegression.forward.

    x:      (B, A, C)  float32 or bfloat16
    coeffs: (A, C)     float (cast to f32 internally)
    returns (B, C) in x.dtype
    """
    B, A, C = x.shape
    assert coeffs.shape == (A, C)

    # Fold 1/temperature into coeffs (tiny: A*C elements). Works for traced
    # temperatures too; skipped statically when it is the Python constant 1.
    coeffs_f32 = coeffs.astype(jnp.float32)
    if not (isinstance(temperature, (int, float)) and temperature == 1):
        coeffs_f32 = coeffs_f32 / temperature
    coeffs2d = coeffs_f32.reshape(1, A * C)

    # Contiguous (free) reshape -- the aug axis lives on lanes.
    x2d = x.reshape(B, A * C)

    itemsize = jnp.dtype(x.dtype).itemsize
    row_align = max(8, 32 // itemsize)          # 8 rows f32, 16 bf16, 32 int8

    # Per-generation VMEM budget for the double-buffered working set.
    try:
        vmem_cap = int(pltpu.get_tpu_info().vmem_capacity_bytes)
    except Exception:
        vmem_cap = 64 * 1024 * 1024             # conservative (v7x physical VMEM)
    budget = min(vmem_cap // 4, 24 * 1024 * 1024)   # ~16 MiB on v7x, 24 MiB else

    bytes_per_row = (A * C + C) * itemsize      # x row in + out row out
    coeffs_bytes = 2 * A * C * 4                # (double-buffered) resident coeffs

    if B <= row_align:
        tb = B                                  # block dim == full dim: always legal
    else:
        # Largest tb the VMEM budget allows (double-buffered in + out).
        tb_vmem = _round_down(
            max(row_align, (budget - coeffs_bytes) // (2 * bytes_per_row)),
            row_align)
        # Target ~4 MiB input blocks so per-step overhead is negligible.
        tb_tgt = _round_down(
            max(row_align, target_block_bytes // max(1, A * C * itemsize)),
            row_align)
        tb = max(row_align, min(tb_vmem, tb_tgt))
        # Guarantee >= 2 grid blocks so both v7x TensorCores get work
        # (harmless extra grid step on single-TC v5e/v6e).
        if B >= 2 * row_align:
            tb = min(tb, _round_up((B + 1) // 2, row_align))
        tb = min(tb, _round_down(B, row_align))  # keep the block within the array

    n_blocks = -(-B // tb)
    grid = (n_blocks,)

    # Deeper input buffering only when blocks are small and there is enough
    # grid depth for it to hide DMA issue latency.
    x_block_bytes = tb * A * C * itemsize
    x_buffers = 3 if (n_blocks >= 3 and x_block_bytes <= 1024 * 1024) else 2
    x_spec_kwargs = {}
    if x_buffers == 3:
        x_spec_kwargs["pipeline_mode"] = pl.Buffered(3)

    kernel = functools.partial(_tta_regression_kernel, n_augs=A, n_classes=C)

    # Only raise the scoped VMEM limit when the actual working set needs it;
    # cap at 32 MiB so it stays safe on v7x (64 MiB physical).
    working = (x_buffers * x_block_bytes + 2 * tb * C * itemsize + coeffs_bytes)
    cp_kwargs = dict(dimension_semantics=("parallel",))
    if working > 12 * 1024 * 1024:
        cp_kwargs["vmem_limit_bytes"] = int(
            min(max(working * 5 // 4, 16 * 1024 * 1024), 32 * 1024 * 1024))

    out = pl.pallas_call(
        kernel,
        out_shape=jax.ShapeDtypeStruct((B, C), x.dtype),
        grid_spec=pltpu.PrefetchScalarGridSpec(
            num_scalar_prefetch=0,
            grid=grid,
            in_specs=[
                pl.BlockSpec((tb, A * C), lambda i: (i, 0), **x_spec_kwargs),
                pl.BlockSpec((1, A * C), lambda i: (0, 0)),
            ],
            out_specs=pl.BlockSpec((tb, C), lambda i: (i, 0)),
        ),
        compiler_params=pltpu.CompilerParams(**cp_kwargs),
    )(x2d, coeffs2d)

    return out


if __name__ == "__main__":
    # 1) Shapes consistent with the module: B=8, n_augs=4, n_classes=128, T=1.
    B, n_augs, n_classes = 8, 4, 128
    key = jax.random.PRNGKey(0)
    x = jax.random.normal(key, (B, n_augs, n_classes), dtype=jnp.float32)
    # Deterministic 'even' initialization: coeffs filled with 1 / n_augs.
    coeffs = jnp.full((n_augs, n_classes), 1.0 / n_augs, dtype=jnp.float32)

    out = jax.block_until_ready(tta_regression_forward(x, coeffs, temperature=1.0))
    ref = jnp.sum(coeffs[None, :, :] * x, axis=1)
    assert out.shape == (B, n_classes)
    assert jnp.allclose(out, ref, atol=1e-5, rtol=1e-5)

    # 2) Ragged n_classes (no padding of x), non-trivial temperature,
    #    multi-block grid with a masked boundary block.
    B2, A2, C2 = 20, 3, 96
    x2 = jax.random.normal(jax.random.PRNGKey(1), (B2, A2, C2), jnp.float32)
    c2 = jnp.full((A2, C2), 1.0 / A2, jnp.float32)
    out2 = jax.block_until_ready(tta_regression_forward(x2, c2, temperature=2.5))
    ref2 = jnp.sum(c2[None, :, :] * (x2 / 2.5), axis=1)
    assert jnp.allclose(out2, ref2, atol=1e-5, rtol=1e-5)

    # 3) bf16 inputs: 16-row alignment, f32 accumulation, bf16 output store.
    B3, A3, C3 = 24, 5, 64
    x3 = jax.random.normal(jax.random.PRNGKey(2), (B3, A3, C3), jnp.bfloat16)
    c3 = jnp.full((A3, C3), 1.0 / A3, jnp.float32)
    out3 = jax.block_until_ready(tta_regression_forward(x3, c3, temperature=1.7))
    ref3 = jnp.sum(c3[None, :, :] * (x3.astype(jnp.float32) / 1.7), axis=1)
    assert out3.dtype == jnp.bfloat16
    assert jnp.allclose(out3.astype(jnp.float32), ref3, atol=2e-2, rtol=2e-2)

    print("KERNEL_OK")
</pallas_src>

<mosaic_0001>
module attributes {stable_mosaic.version = 11 : i64} {
  func.func @_tta_regression_kernel(%arg0: i32, %arg1: memref<8x512xf32, #tpu.memory_space<vmem>>, %arg2: memref<1x512xf32, #tpu.memory_space<vmem>>, %arg3: memref<8x128xf32, #tpu.memory_space<vmem>>) attributes {dimension_semantics = [#tpu.dimension_semantics<parallel>], iteration_bounds = array<i64: 1>, scalar_prefetch = 0 : i64, scratch_operands = 0 : i64, tpu.core_type = #tpu.core_type<tc>, window_params = [{transform_indices = @transform_0, window_bounds = array<i64: 8, 512>}, {pipeline_mode = #tpu.pipeline_mode<synchronous>, transform_indices = @transform_1, window_bounds = array<i64: 1, 512>}, {transform_indices = @transform_2, window_bounds = array<i64: 8, 128>}]} {
    %c0 = arith.constant 0 : index
    %c0_0 = arith.constant 0 : index
    %0 = vector.load %arg1[%c0, %c0_0] : memref<8x512xf32, #tpu.memory_space<vmem>>, vector<8x128xf32>
    %c0_1 = arith.constant 0 : index
    %c0_2 = arith.constant 0 : index
    %1 = vector.load %arg2[%c0_1, %c0_2] : memref<1x512xf32, #tpu.memory_space<vmem>>, vector<1x128xf32>
    %2 = vector.broadcast %1 : vector<1x128xf32> to vector<8x128xf32>
    %3 = arith.mulf %2, %0 : vector<8x128xf32>
    %c0_3 = arith.constant 0 : index
    %c128 = arith.constant 128 : index
    %4 = vector.load %arg1[%c0_3, %c128] : memref<8x512xf32, #tpu.memory_space<vmem>>, vector<8x128xf32>
    %c0_4 = arith.constant 0 : index
    %c128_5 = arith.constant 128 : index
    %5 = vector.load %arg2[%c0_4, %c128_5] : memref<1x512xf32, #tpu.memory_space<vmem>>, vector<1x128xf32>
    %6 = vector.broadcast %5 : vector<1x128xf32> to vector<8x128xf32>
    %7 = arith.mulf %6, %4 : vector<8x128xf32>
    %8 = arith.addf %3, %7 : vector<8x128xf32>
    %c0_6 = arith.constant 0 : index
    %c256 = arith.constant 256 : index
    %9 = vector.load %arg1[%c0_6, %c256] : memref<8x512xf32, #tpu.memory_space<vmem>>, vector<8x128xf32>
    %c0_7 = arith.constant 0 : index
    %c256_8 = arith.constant 256 : index
    %10 = vector.load %arg2[%c0_7, %c256_8] : memref<1x512xf32, #tpu.memory_space<vmem>>, vector<1x128xf32>
    %11 = vector.broadcast %10 : vector<1x128xf32> to vector<8x128xf32>
    %12 = arith.mulf %11, %9 : vector<8x128xf32>
    %13 = arith.addf %8, %12 : vector<8x128xf32>
    %c0_9 = arith.constant 0 : index
    %c384 = arith.constant 384 : index
    %14 = vector.load %arg1[%c0_9, %c384] : memref<8x512xf32, #tpu.memory_space<vmem>>, vector<8x128xf32>
    %c0_10 = arith.constant 0 : index
    %c384_11 = arith.constant 384 : index
    %15 = vector.load %arg2[%c0_10, %c384_11] : memref<1x512xf32, #tpu.memory_space<vmem>>, vector<1x128xf32>
    %16 = vector.broadcast %15 : vector<1x128xf32> to vector<8x128xf32>
    %17 = arith.mulf %16, %14 : vector<8x128xf32>
    %18 = arith.addf %13, %17 : vector<8x128xf32>
    %c0_12 = arith.constant 0 : index
    %c0_13 = arith.constant 0 : index
    %19 = vector.load %arg3[%c0_12, %c0_13] : memref<8x128xf32, #tpu.memory_space<vmem>>, vector<8x128xf32>
    tpu.vector_store %arg3[%c0_12, %c0_13], %18 {strides = array<i32>} : memref<8x128xf32, #tpu.memory_space<vmem>>, vector<8x128xf32>,
    return
  }
  func.func @transform_0(%arg0: i32) -> (i32, i32) {
    %c0_i32 = arith.constant 0 : i32
    %c0_i32_0 = arith.constant 0 : i32
    return %arg0, %c0_i32 : i32, i32
  }
  func.func @transform_1(%arg0: i32) -> (i32, i32) {
    %c0_i32 = arith.constant 0 : i32
    %c0_i32_0 = arith.constant 0 : i32
    %c0_i32_1 = arith.constant 0 : i32
    return %c0_i32, %c0_i32_0 : i32, i32
  }
  func.func @transform_2(%arg0: i32) -> (i32, i32) {
    %c0_i32 = arith.constant 0 : i32
    %c0_i32_0 = arith.constant 0 : i32
    return %arg0, %c0_i32 : i32, i32
  }
}

</mosaic_0001>

<llo_original>
// kernel: tpu_custom_call.1
$region0: #{tpu_custom_call.1}
  #allocation0 [shape = 'u32[]', space=smem, size = 0x4, offset = 0x4, fixed_abs, tag = 'smem constant byte address 0x4 - core index']
  #allocation1 [shape = 'u32[144,128]{1,0:T(1,128)}', space=vmem, size = 0x12000, scoped, tag = 'internal scratch']
  %s0 = inlined_call_operand.hbm [shape: f32[8,512], index: 0, kind: input, shape index: {}]
  %s1 = inlined_call_operand.hbm [shape: f32[1,512], index: 1, kind: input, shape index: {}]
  %s2 = inlined_call_operand.hbm [shape: f32[8,128], index: 2, kind: output, shape index: {}]
  %s3 = sld [smem:[#allocation0]]
  $region26: #{tpu_custom_call.1} parent=0
    _
  %s5 = ssub.s32 1, %s3
  %s6 = scalar_select 0, %s5, %s3
  $region1: #{tpu_custom_call.1} parent=0
    #allocation2 [shape = 'u8[16384]{0}', space=vmem, size = 0x4000, scoped, tag = 'input window, operand 0, single buffered']
    #allocation3 [shape = 's32[1]{0}', space=sflag, size = 0x4, scoped, tag = 'scoped memory for tpu_custom_call.1']
    #allocation4 [shape = 's32[1]{0}', space=sflag, size = 0x4, scoped, tag = 'scoped memory for tpu_custom_call.1']
    #allocation5 [shape = 'u8[2048]{0}', space=vmem, size = 0x800, scoped, tag = 'input window, operand 1, single buffered']
    #allocation6 [shape = 's32[1]{0}', space=sflag, size = 0x4, scoped, tag = 'scoped memory for tpu_custom_call.1']
    #allocation7 [shape = 'u8[4096]{0}', space=vmem, size = 0x1000, scoped, tag = 'output window, operand 0, single buffered']
    %7 = vsyncpa [#allocation3], 0
    %8 = vsyncpa [#allocation6], 0
    %9 = vsyncpa [#allocation4], 0
    // Predicated region
    $region2: #{tpu_custom_call.1} parent=1 // pred_check
      _
    $region3: #{tpu_custom_call.1} parent=1 // pred_check_branch
      %11 = sbr.rel (0) target = $region5
    $region4: #{tpu_custom_call.1} parent=1 // pred_region
      %s13 = ssub.s32 512, 512
      %14 = vsyncadd [#allocation3], %s13
      %s16 = sshll.u32 [#allocation2], 4
      %s17 = int_to_ptr.vmem [resolvable:$true] %s16
      %19 = dma.hbm_to_vmem [thread:$0]  %s0, 512, %s17, [#allocation3]
    $region5: #{tpu_custom_call.1} parent=1 // pred_fallthru
      _
    // Predicated region
    $region6: #{tpu_custom_call.1} parent=1 // pred_check
      _
    $region7: #{tpu_custom_call.1} parent=1 // pred_check_branch
      %21 = sbr.rel (0) target = $region9
    $region8: #{tpu_custom_call.1} parent=1 // pred_region
      %s23 = ssub.s32 64, 64
      %24 = vsyncadd [#allocation6], %s23
      %s26 = sshll.u32 [#allocation5], 4
      %s27 = int_to_ptr.vmem [resolvable:$true] %s26
      %29 = dma.hbm_to_vmem [thread:$0]  %s1, 64, %s27, [#allocation6]
    $region9: #{tpu_custom_call.1} parent=1 // pred_fallthru
      _
    // Predicated region
    $region10: #{tpu_custom_call.1} parent=1 // pred_check
      _
    $region11: #{tpu_custom_call.1} parent=1 // pred_check_branch
      %31 = sbr.rel (0) target = $region13
    $region12: #{tpu_custom_call.1} parent=1 // pred_region
      %32 = dma.done [#allocation3], 512
    $region13: #{tpu_custom_call.1} parent=1 // pred_fallthru
      _
    // Predicated region
    $region14: #{tpu_custom_call.1} parent=1 // pred_check
      _
    $region15: #{tpu_custom_call.1} parent=1 // pred_check_branch
      %34 = sbr.rel (0) target = $region17
    $region16: #{tpu_custom_call.1} parent=1 // pred_region
      %35 = dma.done [#allocation6], 64
    $region17: #{tpu_custom_call.1} parent=1 // pred_fallthru
      _
    %v36 = vld [vmem:[#allocation2] sm:$0xff]
    %v37 = vld [vmem:[#allocation5] sm:$0x1]
    %v39 = vlaneseq
    %v40 = vshrl.u32 %v39, 7
    %v41 = vsub.s32 0, %v40
    %v42 = vrot.slane %v37, %v41
    %v44 = vmul.f32 %v42, %v36
    %v45 = vld [vmem:[#allocation2 + $0x8] sm:$0xff]
    %v46 = vld [vmem:[#allocation5 + $0x1] sm:$0x1]
    %v48 = vlaneseq
    %v49 = vshrl.u32 %v48, 7
    %v50 = vsub.s32 0, %v49
    %v51 = vrot.slane %v46, %v50
    %v53 = vmul.f32 %v51, %v45
    %v54 = vadd.f32 %v44, %v53
    %v55 = vld [vmem:[#allocation2 + $0x10] sm:$0xff]
    %v56 = vld [vmem:[#allocation5 + $0x2] sm:$0x1]
    %v58 = vlaneseq
    %v59 = vshrl.u32 %v58, 7
    %v60 = vsub.s32 0, %v59
    %v61 = vrot.slane %v56, %v60
    %v63 = vmul.f32 %v61, %v55
    %v64 = vadd.f32 %v54, %v63
    %v65 = vld [vmem:[#allocation2 + $0x18] sm:$0xff]
    %v66 = vld [vmem:[#allocation5 + $0x3] sm:$0x1]
    %v68 = vlaneseq
    %v69 = vshrl.u32 %v68, 7
    %v70 = vsub.s32 0, %v69
    %v71 = vrot.slane %v66, %v70
    %v73 = vmul.f32 %v71, %v65
    %v74 = vadd.f32 %v64, %v73
    %75 = vst [vmem:[#allocation7] sm:$0xff] %v74
    // Predicated region
    $region18: #{tpu_custom_call.1} parent=1 // pred_check
      _
    $region19: #{tpu_custom_call.1} parent=1 // pred_check_branch
      %77 = sbr.rel (0) target = $region21
    $region20: #{tpu_custom_call.1} parent=1 // pred_region
      %s79 = ssub.s32 128, 128
      %80 = vsyncadd [#allocation4], %s79
      %s82 = sshll.u32 [#allocation7], 4
      %s83 = int_to_ptr.vmem [resolvable:$true] %s82
      %85 = dma.vmem_to_hbm [thread:$0]  %s83, 128, %s2, [#allocation4]
    $region21: #{tpu_custom_call.1} parent=1 // pred_fallthru
      _
    // Predicated region
    $region22: #{tpu_custom_call.1} parent=1 // pred_check
      _
    $region23: #{tpu_custom_call.1} parent=1 // pred_check_branch
      %87 = sbr.rel (0) target = $region25
    $region24: #{tpu_custom_call.1} parent=1 // pred_region
      %88 = dma.done [#allocation4], 128
    $region25: #{tpu_custom_call.1} parent=1 // pred_fallthru
      _
    %89 = vsyncpa [#allocation3], 1
    %90 = vsyncpa [#allocation6], 1
    %91 = vsyncpa [#allocation4], 1

</llo_original>
